<compile_context>
chip_gen: v7x
topology: tpu7x:2x2x1
jax: 0.10.0
libtpu: 0.0.40
codegen_flags: <defaults>
</compile_context>

<pallas_src>
import functools

import jax
import jax.numpy as jnp
from jax.experimental import pallas as pl
from jax.experimental.pallas import tpu as pltpu


def _round_up(x, m):
    return ((x + m - 1) // m) * m


def _cdiv(a, b):
    return (a + b - 1) // b


def _gelu_exact(x):
    # PyTorch nn.GELU() default = exact erf formulation (kept for semantic parity).
    # Perf note: on v6e/v7x jax.nn.gelu(approximate=True) would move the transcendental to
    # the EUP slot; kept exact here so outputs match the PyTorch module.
    return 0.5 * x * (1.0 + jax.lax.erf(x * (1.0 / jnp.sqrt(2.0).astype(x.dtype))))


def _pad2(x, rows, cols, dtype):
    x = x.astype(dtype)
    return jnp.pad(x, ((0, rows - x.shape[0]), (0, cols - x.shape[1])))


def _tpu_vmem_caps():
    """Returns (physical VMEM bytes per core, safe request cap with headroom)."""
    try:
        phys = int(pltpu.get_tpu_info().vmem_capacity_bytes)
    except Exception:
        phys = 64 << 20  # conservative default (v7x per-TensorCore VMEM)
    # Never request all of physical VMEM: leave ~15% for Mosaic internal scratch / spills.
    return phys, int(phys * 0.85)


# --------------------------------------------------------------------------- fused path

def _supcon_head_kernel(feat_ref, w1_ref, b1_ref, w2_ref, b2_ref, w3_ref, b3_ref,
                        out_ref):
    """Fused projection head for one TM-row batch tile.

    feat_ref: (TM, D1) bf16      w1/w2: (D1, D1) bf16     w3: (D1, D2) bf16
    b1/b2:    (1, D1)  f32       b3:    (1, D2)  f32      out: (TM, D2)
    """
    feat = feat_ref[...]

    h = jnp.dot(feat, w1_ref[...], preferred_element_type=jnp.float32)
    h = _gelu_exact(h + b1_ref[...])

    h = jnp.dot(h.astype(jnp.bfloat16), w2_ref[...],
                preferred_element_type=jnp.float32)
    h = _gelu_exact(h + b2_ref[...])

    z = jnp.dot(h.astype(jnp.bfloat16), w3_ref[...],
                preferred_element_type=jnp.float32) + b3_ref[...]

    # F.normalize(z, dim=1): z / max(||z||, 1e-12)  ==  z * rsqrt(max(||z||^2, 1e-24))
    sumsq = jnp.sum(z * z, axis=1, keepdims=True)
    z = z * jax.lax.rsqrt(jnp.maximum(sumsq, 1e-24))

    out_ref[...] = z.astype(out_ref.dtype)


# ------------------------------------------------------------------- K-tiled fallback path

def _linear_kernel(x_ref, w_ref, b_ref, out_ref, acc_ref, *, activation, normalize):
    """One Linear layer with a K-tiled reduction grid axis and fused epilogue."""
    k = pl.program_id(2)

    @pl.when(k == 0)
    def _():
        acc_ref[...] = jnp.zeros_like(acc_ref)

    acc_ref[...] += jnp.dot(x_ref[...], w_ref[...], preferred_element_type=jnp.float32)

    @pl.when(k == pl.num_programs(2) - 1)
    def _():
        z = acc_ref[...] + b_ref[...]
        if activation:
            z = _gelu_exact(z)
        if normalize:
            sumsq = jnp.sum(z * z, axis=1, keepdims=True)
            z = z * jax.lax.rsqrt(jnp.maximum(sumsq, 1e-24))
        out_ref[...] = z.astype(out_ref.dtype)


def _pick_tile(dim, cap):
    # Largest multiple-of-128 divisor of `dim` that is <= cap (dim is a multiple of 128).
    t = min(dim, cap)
    while dim % t:
        t -= 128
    return max(t, 128)


def _tiled_linear(x, w, b, *, tm, tn, tk, activation, normalize, out_dtype, vmem_cap):
    M, K = x.shape
    N = w.shape[1]
    grid = (M // tm, N // tn, K // tk)
    if normalize:
        assert grid[1] == 1, "L2-normalize epilogue needs the full row in one N tile"

    out_bytes = jnp.dtype(out_dtype).itemsize
    need = int((2 * (tm * tk + tk * tn) * 2          # double-buffered x / w tiles (bf16)
                + 2 * tn * 4                          # bias tile
                + 2 * tm * tn * out_bytes             # double-buffered output tile
                + tm * tn * 4) * 1.25)                # f32 accumulator + headroom
    vmem_bytes = int(min(max(need, 16 << 20), vmem_cap))

    kernel = functools.partial(_linear_kernel, activation=activation, normalize=normalize)
    return pl.pallas_call(
        kernel,
        out_shape=jax.ShapeDtypeStruct((M, N), out_dtype),
        grid=grid,
        in_specs=[
            pl.BlockSpec((tm, tk), lambda i, j, k: (i, k)),
            pl.BlockSpec((tk, tn), lambda i, j, k: (k, j)),
            pl.BlockSpec((1, tn), lambda i, j, k: (0, j)),
        ],
        out_specs=pl.BlockSpec((tm, tn), lambda i, j, k: (i, j)),
        scratch_shapes=[pltpu.VMEM((tm, tn), jnp.float32)],
        compiler_params=pltpu.CompilerParams(
            dimension_semantics=("parallel", "parallel", "arbitrary"),
            vmem_limit_bytes=vmem_bytes,
        ),
    )(x, w, b)


def _supcon_head_ktiled(feat_p, w1_p, b1_p, w2_p, b2_p, w3_p, b3_p, *,
                        tm, d1, d2, vmem_cap, out_dtype):
    """Fallback for dim_in too large for VMEM-resident weights: stream weight blocks."""
    tk = _pick_tile(d1, 512)
    tn = _pick_tile(d1, 512)
    h = _tiled_linear(feat_p, w1_p, b1_p, tm=tm, tn=tn, tk=tk, activation=True,
                      normalize=False, out_dtype=jnp.bfloat16, vmem_cap=vmem_cap)
    h = _tiled_linear(h, w2_p, b2_p, tm=tm, tn=tn, tk=tk, activation=True,
                      normalize=False, out_dtype=jnp.bfloat16, vmem_cap=vmem_cap)
    # feature_dim is small, so the whole output row fits one N tile and the L2-normalize
    # epilogue fuses into the last reduction step of the final layer.
    z = _tiled_linear(h, w3_p, b3_p, tm=tm, tn=d2, tk=tk, activation=False,
                      normalize=True, out_dtype=out_dtype, vmem_cap=vmem_cap)
    return z


# ------------------------------------------------------------------------------ wrapper

def supcon_head(feat, params, *, max_tile_m=None, force_ktiled=False,
                out_dtype=jnp.float32):
    """Run the projection head kernels on encoder features of shape (B, dim_in)."""
    w1, b1, w2, b2, w3, b3 = params
    B, dim_in = feat.shape
    feature_dim = w3.shape[1]

    # Hardware-friendly padded sizes (lane dim -> multiple of 128).
    d1 = _round_up(dim_in, 128)
    d2 = _round_up(feature_dim, 128)

    phys_vmem, vmem_cap = _tpu_vmem_caps()
    if max_tile_m is None:
        # v5e/v6e: 128 MiB physical VMEM -> larger batch tiles; v7x: 64 MiB -> 256.
        max_tile_m = 512 if phys_vmem >= (96 << 20) else 256

    # Balanced batch tiling:
    #   * >= 2 grid steps so dimension_semantics=("parallel",) can shard across v7x's two
    #     TensorCores (negligible overhead on single-TC v5e/v6e),
    #   * tile size balanced across tiles so the last tile carries < 8 rows of padding.
    n_tiles = max(2, _cdiv(B, max_tile_m))
    tm = _round_up(_cdiv(B, n_tiles), 8)
    b_pad = n_tiles * tm

    # Zero-pad operands (exact: zero rows/cols contribute nothing to dots / norm).
    feat_p = _pad2(feat, b_pad, d1, jnp.bfloat16)
    w1_p = _pad2(w1, d1, d1, jnp.bfloat16)
    w2_p = _pad2(w2, d1, d1, jnp.bfloat16)
    w3_p = _pad2(w3, d1, d2, jnp.bfloat16)
    b1_p = _pad2(b1.reshape(1, -1), 1, d1, jnp.float32)
    b2_p = _pad2(b2.reshape(1, -1), 1, d1, jnp.float32)
    b3_p = _pad2(b3.reshape(1, -1), 1, d2, jnp.float32)

    # VMEM budget: weights/biases single-buffered (whole-array residents), streamed
    # feat/out tiles double-buffered by the pipeline, f32 intermediates, +25% headroom.
    out_bytes = jnp.dtype(out_dtype).itemsize
    weight_bytes = (2 * d1 * d1 + d1 * d2) * 2 + (2 * d1 + d2) * 4
    stream_bytes = 2 * tm * d1 * 2 + 2 * tm * d2 * out_bytes
    interm_bytes = 3 * tm * max(d1, d2) * 4
    fused_need = int((weight_bytes + stream_bytes + interm_bytes) * 1.25)

    if force_ktiled or fused_need > vmem_cap:
        # Weights cannot stay VMEM-resident (e.g. dim_in >~ 4k on v7x): K-tiled fallback.
        out = _supcon_head_ktiled(feat_p, w1_p, b1_p, w2_p, b2_p, w3_p, b3_p,
                                  tm=tm, d1=d1, d2=d2, vmem_cap=vmem_cap,
                                  out_dtype=out_dtype)
        return out[:B, :feature_dim]

    vmem_bytes = int(min(max(fused_need, 16 << 20), vmem_cap))

    # Whole-array VMEM residency: copied in once, NOT double-buffered across grid steps.
    resident = pl.BlockSpec(memory_space=pltpu.MemorySpace.VMEM)

    out = pl.pallas_call(
        _supcon_head_kernel,
        out_shape=jax.ShapeDtypeStruct((b_pad, d2), out_dtype),
        grid=(n_tiles,),
        in_specs=[
            pl.BlockSpec((tm, d1), lambda i: (i, 0)),   # streamed feature tile
            resident, resident,                          # w1, b1 (VMEM-resident)
            resident, resident,                          # w2, b2
            resident, resident,                          # w3, b3
        ],
        out_specs=pl.BlockSpec((tm, d2), lambda i: (i, 0)),
        compiler_params=pltpu.CompilerParams(
            dimension_semantics=("parallel",),           # shards steps across v7x's 2 TCs
            vmem_limit_bytes=vmem_bytes,
        ),
    )(feat_p, w1_p, b1_p, w2_p, b2_p, w3_p, b3_p)

    return out[:B, :feature_dim]


def encoder_stub(x, enc_w, enc_b):
    """Stand-in for the external `base_model` ResNet encoder.

    Input x: NCHW (B, C, H, W) -> global average pool -> linear to dim_in.
    """
    # TODO(synk): the real `base_model` (e.g. ResNet34/50) is passed in externally and is
    # not defined by this module; a GAP + linear stub is used instead.
    pooled = jnp.mean(x, axis=(2, 3))            # (B, C)
    return pooled @ enc_w + enc_b                # (B, dim_in)


def supcon_resnet_forward(x, enc_params, head_params):
    """Mirror of SupConResNet.forward: supports a single tensor or a 2-view list."""
    enc_w, enc_b = enc_params
    if isinstance(x, (list, tuple)) and len(x) == 2:
        f1 = encoder_stub(x[0], enc_w, enc_b)
        f2 = encoder_stub(x[1], enc_w, enc_b)
        b = f1.shape[0]
        # Single kernel call on the concatenated 2B batch: halves weight DMA / launch
        # overhead and doubles the M feeding the MXU.
        z = supcon_head(jnp.concatenate([f1, f2], axis=0), head_params)
        return [z[:b], z[b:]]
    feat = encoder_stub(x, enc_w, enc_b)
    return supcon_head(feat, head_params)


def head_reference(feat, params):
    """Pure-JAX f32 reference of the projection head (for correctness checks)."""
    w1, b1, w2, b2, w3, b3 = params
    h = _gelu_exact(feat @ w1 + b1)
    h = _gelu_exact(h @ w2 + b2)
    z = h @ w3 + b3
    return z / jnp.maximum(jnp.linalg.norm(z, axis=1, keepdims=True), 1e-12)


def init_params(key, in_channels, dim_in, feature_dim):
    """Deterministic PyTorch-Linear-style init (uniform +-1/sqrt(fan_in))."""
    ks = jax.random.split(key, 8)

    def lin(kw, kb, fan_in, fan_out):
        bound = 1.0 / jnp.sqrt(fan_in)
        w = jax.random.uniform(kw, (fan_in, fan_out), jnp.float32, -bound, bound)
        b = jax.random.uniform(kb, (fan_out,), jnp.float32, -bound, bound)
        return w, b

    enc_w, enc_b = lin(ks[0], ks[1], in_channels, dim_in)
    w1, b1 = lin(ks[2], ks[3], dim_in, dim_in)
    w2, b2 = lin(ks[4], ks[5], dim_in, dim_in)
    w3, b3 = lin(ks[6], ks[7], dim_in, feature_dim)
    return (enc_w, enc_b), (w1, b1, w2, b2, w3, b3)


if __name__ == "__main__":
    key = jax.random.PRNGKey(0)
    k_x1, k_x2, k_p = jax.random.split(key, 3)

    B, C, H, W = 2, 4, 16, 16          # NCHW input, small synthetic shapes
    dim_in, feature_dim = 32, 128      # projection head dims (feature_dim = default 128)

    x1 = jax.random.normal(k_x1, (B, C, H, W), jnp.float32)
    x2 = jax.random.normal(k_x2, (B, C, H, W), jnp.float32)
    enc_params, head_params = init_params(k_p, C, dim_in, feature_dim)

    # Single-view path (fused, VMEM-resident-weight kernel).
    out = supcon_resnet_forward(x1, enc_params, head_params)
    out = jax.block_until_ready(out)
    assert out.shape == (B, feature_dim)
    norms = jnp.sqrt(jnp.sum(out * out, axis=1))
    assert jnp.allclose(norms, 1.0, atol=1e-5)

    # Parity against a pure-JAX f32 reference (loose tolerance: kernel uses bf16 matmuls).
    feat = encoder_stub(x1, *enc_params)
    ref = head_reference(feat, head_params)
    assert jnp.allclose(out, ref, atol=3e-2, rtol=3e-2)

    # Two-view contrastive path (single fused kernel call on the concatenated batch).
    out1, out2 = supcon_resnet_forward([x1, x2], enc_params, head_params)
    out1, out2 = jax.block_until_ready((out1, out2))
    assert out1.shape == (B, feature_dim) and out2.shape == (B, feature_dim)
    n1 = jnp.sqrt(jnp.sum(out1 * out1, axis=1))
    n2 = jnp.sqrt(jnp.sum(out2 * out2, axis=1))
    assert jnp.allclose(n1, 1.0, atol=1e-5) and jnp.allclose(n2, 1.0, atol=1e-5)
    # View-1 of the 2-view path must match the single-view result.
    assert jnp.allclose(out1, out, atol=1e-5)

    # Large-dim_in fallback path (per-layer K-tiled kernels) must agree with the fused path.
    out_kt = supcon_head(feat, head_params, force_ktiled=True)
    out_kt = jax.block_until_ready(out_kt)
    assert out_kt.shape == (B, feature_dim)
    assert jnp.allclose(out_kt, out, atol=1e-4)

    print("KERNEL_OK")
</pallas_src>

<mosaic_0001>
module attributes {stable_mosaic.version = 11 : i64} {
  func.func @_supcon_head_kernel(%arg0: i32, %arg1: memref<8x128xbf16, #tpu.memory_space<vmem>>, %arg2: memref<128x128xbf16, #tpu.memory_space<vmem>>, %arg3: memref<1x128xf32, #tpu.memory_space<vmem>>, %arg4: memref<128x128xbf16, #tpu.memory_space<vmem>>, %arg5: memref<1x128xf32, #tpu.memory_space<vmem>>, %arg6: memref<128x128xbf16, #tpu.memory_space<vmem>>, %arg7: memref<1x128xf32, #tpu.memory_space<vmem>>, %arg8: memref<8x128xf32, #tpu.memory_space<vmem>>) attributes {dimension_semantics = [#tpu.dimension_semantics<parallel>], iteration_bounds = array<i64: 2>, scalar_prefetch = 0 : i64, scratch_operands = 0 : i64, tpu.core_type = #tpu.core_type<tc>, window_params = [{transform_indices = @transform_0, window_bounds = array<i64: 8, 128>}, {pipeline_mode = #tpu.pipeline_mode<synchronous>, transform_indices = @transform_1, window_bounds = array<i64: 128, 128>}, {pipeline_mode = #tpu.pipeline_mode<synchronous>, transform_indices = @transform_2, window_bounds = array<i64: 1, 128>}, {pipeline_mode = #tpu.pipeline_mode<synchronous>, transform_indices = @transform_3, window_bounds = array<i64: 128, 128>}, {pipeline_mode = #tpu.pipeline_mode<synchronous>, transform_indices = @transform_4, window_bounds = array<i64: 1, 128>}, {pipeline_mode = #tpu.pipeline_mode<synchronous>, transform_indices = @transform_5, window_bounds = array<i64: 128, 128>}, {pipeline_mode = #tpu.pipeline_mode<synchronous>, transform_indices = @transform_6, window_bounds = array<i64: 1, 128>}, {transform_indices = @transform_7, window_bounds = array<i64: 8, 128>}]} {
    %c0 = arith.constant 0 : index
    %c0_0 = arith.constant 0 : index
    %0 = vector.load %arg1[%c0, %c0_0] : memref<8x128xbf16, #tpu.memory_space<vmem>>, vector<8x128xbf16>
    %c0_1 = arith.constant 0 : index
    %c0_2 = arith.constant 0 : index
    %1 = vector.load %arg2[%c0_1, %c0_2] : memref<128x128xbf16, #tpu.memory_space<vmem>>, vector<128x128xbf16>
    %cst = arith.constant dense<0.000000e+00> : vector<8x128xf32>
    %2 = tpu.matmul %0, %1, %cst {dimension_numbers = #tpu.dot_dimension_numbers<[1], [0], [0], [1], [0, 0, 1, 1], [], []>} : vector<8x128xbf16>, vector<128x128xbf16>, vector<8x128xf32> -> vector<8x128xf32>
    %c0_3 = arith.constant 0 : index
    %c0_4 = arith.constant 0 : index
    %3 = vector.load %arg3[%c0_3, %c0_4] : memref<1x128xf32, #tpu.memory_space<vmem>>, vector<1x128xf32>
    %4 = vector.broadcast %3 : vector<1x128xf32> to vector<8x128xf32>
    %5 = arith.addf %2, %4 : vector<8x128xf32>
    %cst_5 = arith.constant 5.000000e-01 : f32
    %6 = vector.broadcast %cst_5 : f32 to vector<8x128xf32>
    %7 = arith.mulf %6, %5 : vector<8x128xf32>
    %cst_6 = arith.constant 2.000000e+00 : f32
    %8 = math.sqrt %cst_6 : f32
    %cst_7 = arith.constant 1.000000e+00 : f32
    %9 = arith.divf %cst_7, %8 : f32
    %10 = vector.broadcast %9 : f32 to vector<8x128xf32>
    %11 = arith.mulf %5, %10 : vector<8x128xf32>
    %12 = math.erf %11 : vector<8x128xf32>
    %cst_8 = arith.constant 1.000000e+00 : f32
    %13 = vector.broadcast %cst_8 : f32 to vector<8x128xf32>
    %14 = arith.addf %13, %12 : vector<8x128xf32>
    %15 = arith.mulf %7, %14 : vector<8x128xf32>
    %16 = arith.truncf %15 : vector<8x128xf32> to vector<8x128xbf16>
    %c0_9 = arith.constant 0 : index
    %c0_10 = arith.constant 0 : index
    %17 = vector.load %arg4[%c0_9, %c0_10] : memref<128x128xbf16, #tpu.memory_space<vmem>>, vector<128x128xbf16>
    %cst_11 = arith.constant dense<0.000000e+00> : vector<8x128xf32>
    %18 = tpu.matmul %16, %17, %cst_11 {dimension_numbers = #tpu.dot_dimension_numbers<[1], [0], [0], [1], [0, 0, 1, 1], [], []>} : vector<8x128xbf16>, vector<128x128xbf16>, vector<8x128xf32> -> vector<8x128xf32>
    %c0_12 = arith.constant 0 : index
    %c0_13 = arith.constant 0 : index
    %19 = vector.load %arg5[%c0_12, %c0_13] : memref<1x128xf32, #tpu.memory_space<vmem>>, vector<1x128xf32>
    %20 = vector.broadcast %19 : vector<1x128xf32> to vector<8x128xf32>
    %21 = arith.addf %18, %20 : vector<8x128xf32>
    %cst_14 = arith.constant 5.000000e-01 : f32
    %22 = vector.broadcast %cst_14 : f32 to vector<8x128xf32>
    %23 = arith.mulf %22, %21 : vector<8x128xf32>
    %cst_15 = arith.constant 2.000000e+00 : f32
    %24 = math.sqrt %cst_15 : f32
    %cst_16 = arith.constant 1.000000e+00 : f32
    %25 = arith.divf %cst_16, %24 : f32
    %26 = vector.broadcast %25 : f32 to vector<8x128xf32>
    %27 = arith.mulf %21, %26 : vector<8x128xf32>
    %28 = math.erf %27 : vector<8x128xf32>
    %cst_17 = arith.constant 1.000000e+00 : f32
    %29 = vector.broadcast %cst_17 : f32 to vector<8x128xf32>
    %30 = arith.addf %29, %28 : vector<8x128xf32>
    %31 = arith.mulf %23, %30 : vector<8x128xf32>
    %32 = arith.truncf %31 : vector<8x128xf32> to vector<8x128xbf16>
    %c0_18 = arith.constant 0 : index
    %c0_19 = arith.constant 0 : index
    %33 = vector.load %arg6[%c0_18, %c0_19] : memref<128x128xbf16, #tpu.memory_space<vmem>>, vector<128x128xbf16>
    %cst_20 = arith.constant dense<0.000000e+00> : vector<8x128xf32>
    %34 = tpu.matmul %32, %33, %cst_20 {dimension_numbers = #tpu.dot_dimension_numbers<[1], [0], [0], [1], [0, 0, 1, 1], [], []>} : vector<8x128xbf16>, vector<128x128xbf16>, vector<8x128xf32> -> vector<8x128xf32>
    %c0_21 = arith.constant 0 : index
    %c0_22 = arith.constant 0 : index
    %35 = vector.load %arg7[%c0_21, %c0_22] : memref<1x128xf32, #tpu.memory_space<vmem>>, vector<1x128xf32>
    %36 = vector.broadcast %35 : vector<1x128xf32> to vector<8x128xf32>
    %37 = arith.addf %34, %36 : vector<8x128xf32>
    %38 = arith.mulf %37, %37 : vector<8x128xf32>
    %cst_23 = arith.constant dense<0.000000e+00> : vector<8xf32>
    %39 = vector.multi_reduction <add>, %38, %cst_23 [1] : vector<8x128xf32> to vector<8xf32>
    %40 = vector.shape_cast %39 : vector<8xf32> to vector<8x1xf32>
    %cst_24 = arith.constant 1.000000e-24 : f32
    %41 = vector.broadcast %cst_24 : f32 to vector<8x1xf32>
    %42 = arith.maximumf %40, %41 : vector<8x1xf32>
    %43 = math.rsqrt %42 : vector<8x1xf32>
    %44 = vector.broadcast %43 : vector<8x1xf32> to vector<8x128xf32>
    %45 = arith.mulf %37, %44 : vector<8x128xf32>
    %c0_25 = arith.constant 0 : index
    %c0_26 = arith.constant 0 : index
    %46 = vector.load %arg8[%c0_25, %c0_26] : memref<8x128xf32, #tpu.memory_space<vmem>>, vector<8x128xf32>
    tpu.vector_store %arg8[%c0_25, %c0_26], %45 {strides = array<i32>} : memref<8x128xf32, #tpu.memory_space<vmem>>, vector<8x128xf32>,
    return
  }
  func.func @transform_0(%arg0: i32) -> (i32, i32) {
    %c0_i32 = arith.constant 0 : i32
    %c0_i32_0 = arith.constant 0 : i32
    return %arg0, %c0_i32 : i32, i32
  }
  func.func @transform_1(%arg0: i32) -> (i32, i32) {
    %c0_i32 = arith.constant 0 : i32
    %c0_i32_0 = arith.constant 0 : i32
    %c0_i32_1 = arith.constant 0 : i32
    return %c0_i32, %c0_i32_0 : i32, i32
  }
  func.func @transform_2(%arg0: i32) -> (i32, i32) {
    %c0_i32 = arith.constant 0 : i32
    %c0_i32_0 = arith.constant 0 : i32
    %c0_i32_1 = arith.constant 0 : i32
    return %c0_i32, %c0_i32_0 : i32, i32
  }
  func.func @transform_3(%arg0: i32) -> (i32, i32) {
    %c0_i32 = arith.constant 0 : i32
    %c0_i32_0 = arith.constant 0 : i32
    %c0_i32_1 = arith.constant 0 : i32
    return %c0_i32, %c0_i32_0 : i32, i32
  }
  func.func @transform_4(%arg0: i32) -> (i32, i32) {
    %c0_i32 = arith.constant 0 : i32
    %c0_i32_0 = arith.constant 0 : i32
    %c0_i32_1 = arith.constant 0 : i32
    return %c0_i32, %c0_i32_0 : i32, i32
  }
  func.func @transform_5(%arg0: i32) -> (i32, i32) {
    %c0_i32 = arith.constant 0 : i32
    %c0_i32_0 = arith.constant 0 : i32
    %c0_i32_1 = arith.constant 0 : i32
    return %c0_i32, %c0_i32_0 : i32, i32
  }
  func.func @transform_6(%arg0: i32) -> (i32, i32) {
    %c0_i32 = arith.constant 0 : i32
    %c0_i32_0 = arith.constant 0 : i32
    %c0_i32_1 = arith.constant 0 : i32
    return %c0_i32, %c0_i32_0 : i32, i32
  }
  func.func @transform_7(%arg0: i32) -> (i32, i32) {
    %c0_i32 = arith.constant 0 : i32
    %c0_i32_0 = arith.constant 0 : i32
    return %arg0, %c0_i32 : i32, i32
  }
}

</mosaic_0001>

<llo_original>
// kernel: tpu_custom_call.1
$region0: #{tpu_custom_call.1}
  #allocation0 [shape = 'u32[]', space=smem, size = 0x4, offset = 0x4, fixed_abs, tag = 'smem constant byte address 0x4 - core index']
  #allocation1 [shape = 'u32[144,128]{1,0:T(1,128)}', space=vmem, size = 0x12000, scoped, tag = 'internal scratch']
  %s0 = inlined_call_operand.hbm [shape: bf16[16,128], index: 0, kind: input, shape index: {}]
  %s1 = inlined_call_operand.hbm [shape: bf16[128,128], index: 1, kind: input, shape index: {}]
  %s2 = inlined_call_operand.vmem [shape: f32[1,128], index: 2, kind: input, shape index: {}]
  %s3 = inlined_call_operand.hbm [shape: bf16[128,128], index: 3, kind: input, shape index: {}]
  %s4 = inlined_call_operand.vmem [shape: f32[1,128], index: 4, kind: input, shape index: {}]
  %s5 = inlined_call_operand.hbm [shape: bf16[128,128], index: 5, kind: input, shape index: {}]
  %s6 = inlined_call_operand.vmem [shape: f32[1,128], index: 6, kind: input, shape index: {}]
  %s7 = inlined_call_operand.hbm [shape: f32[16,128], index: 7, kind: output, shape index: {}]
  %s8 = sld [smem:[#allocation0]]
  $region77: #{tpu_custom_call.1} parent=0
    _
  %s10 = ssub.s32 1, %s8
  %s11 = scalar_select 0, %s10, %s8
  $region1: #{tpu_custom_call.1} parent=0
    #allocation2 [shape = 'u8[4096]{0}', space=vmem, size = 0x1000, scoped, tag = 'input window, operand 0']
    #allocation3 [shape = 's32[2]{0}', space=sflag, size = 0x8, scoped, tag = 'scoped memory for tpu_custom_call.1']
    #allocation4 [shape = 's32[2]{0}', space=sflag, size = 0x8, scoped, tag = 'scoped memory for tpu_custom_call.1']
    #allocation5 [shape = 'u8[32768]{0}', space=vmem, size = 0x8000, scoped, tag = 'input window, operand 1, single buffered']
    #allocation6 [shape = 's32[1]{0}', space=sflag, size = 0x4, scoped, tag = 'scoped memory for tpu_custom_call.1']
    #allocation7 [shape = 'u8[32768]{0}', space=vmem, size = 0x8000, scoped, tag = 'input window, operand 3, single buffered']
    #allocation8 [shape = 'u8[32768]{0}', space=vmem, size = 0x8000, scoped, tag = 'input window, operand 5, single buffered']
    #allocation9 [shape = 's32[1]{0}', space=sflag, size = 0x4, scoped, tag = 'scoped memory for tpu_custom_call.1']
    #allocation10 [shape = 'u8[8192]{0}', space=vmem, size = 0x2000, scoped, tag = 'output window, operand 0']
    %12 = vsyncpa [#allocation3], 0
    %s13 = scalar_lea.sflag [#allocation3], 1
    %14 = vsyncpa %s13, 0
    %15 = vsyncpa [#allocation6], 0
    %16 = vsyncpa [#allocation9], 0
    %17 = vsyncpa [#allocation4], 0
    %s18 = scalar_lea.sflag [#allocation4], 1
    %19 = vsyncpa %s18, 0
    loop: start=0, step=1, limit=4
    $region2: #{tpu_custom_call.1} parent=1 // loop_pre_header
      _
    $region3: #{tpu_custom_call.1} parent=1 // loop_header
      %s21 = sphi 0, %s25
      %p22 = scmp.ge.s32.totalorder %s21, 4
      %s31 = sphi 0, %s33
      %s34 = sphi 0, %s31
      %s35 = sphi 0, %s34
      %s51 = sphi 0, %s35
      %s55 = sphi 0, %s55
      %s57 = sphi 0, %s55
      %s58 = sphi 0, %s57
      %s72 = sphi 0, %s58
      %s76 = sphi 0, %s76
      %s78 = sphi 0, %s76
      %s79 = sphi 0, %s78
      %s93 = sphi 0, %s79
      %s97 = sphi 0, %s97
      %s99 = sphi 0, %s97
      %s100 = sphi 0, %s99
      %s114 = sphi 0, %s100
      %s118 = sphi 0, %s118
      %s120 = sphi 0, %s118
      %s121 = sphi 0, %s120
      %s135 = sphi 0, %s121
      %s139 = sphi 0, %s139
      %s141 = sphi 0, %s139
      %s142 = sphi 0, %s141
      %s156 = sphi 0, %s142
      %s160 = sphi 0, %s160
      %s162 = sphi 0, %s160
      %s163 = sphi 0, %s162
      %s177 = sphi 0, %s163
      %s183 = sphi 0, %s185
      %s186 = sphi 0, %s183
      %s187 = sphi 0, %s186
      %s203 = sphi 0, %s187
    $region4: #{tpu_custom_call.1} parent=1 // loop_header_branch
      %24 = sbr.rel (%p22) target = $region8
    $region5: #{tpu_custom_call.1} parent=1 // loop_body
      %s26 = ssub.s32 %s21, 1
      %s27 = ssub.s32 %s21, 2
      %s28 = sadd.s32 %s21, 1
      %s29 = ssub.s32 %s21, %s28
      %p30 = scmp.eq.s32.totalorder %s29, 0
      %s32 = sadd.s32 %s31, 1
      %s33 = scalar_select %p30, %s31, %s32
      %p36 = pneg %p30
      %p37 = scmp.eq.s32.totalorder %s21, 1
      %p38 = por %p36, %p37
      %p39 = scmp.ne.s32.totalorder %s31, %s34
      %p40 = scmp.eq.s32.totalorder %s21, 0
      %p41 = por %p39, %p40
      %p42 = scmp.ne.s32.totalorder %s31, %s34
      %p43 = scmp.eq.s32.totalorder %s26, 1
      %p44 = por %p42, %p43
      %p45 = scmp.ne.s32.totalorder %s34, %s35
      %p46 = scmp.eq.s32.totalorder %s26, 0
      %p47 = por %p45, %p46
      %p48 = scmp.ne.s32.totalorder %s34, %s35
      %p49 = scmp.eq.s32.totalorder %s27, 1
      %p50 = por %p48, %p49
      %p52 = scmp.ne.s32.totalorder %s35, %s51
      %p53 = scmp.eq.s32.totalorder %s27, 0
      %p54 = por %p52, %p53
      %s56 = sadd.s32 %s55, 1
      %p59 = scmp.eq.s32.totalorder %s21, 1
      %p60 = scmp.ne.s32.totalorder %s55, %s57
      %p61 = scmp.eq.s32.totalorder %s21, 0
      %p62 = por %p60, %p61
      %p63 = scmp.ne.s32.totalorder %s55, %s57
      %p64 = scmp.eq.s32.totalorder %s26, 1
      %p65 = por %p63, %p64
      %p66 = scmp.ne.s32.totalorder %s57, %s58
      %p67 = scmp.eq.s32.totalorder %s26, 0
      %p68 = por %p66, %p67
      %p69 = scmp.ne.s32.totalorder %s57, %s58
      %p70 = scmp.eq.s32.totalorder %s27, 1
      %p71 = por %p69, %p70
      %p73 = scmp.ne.s32.totalorder %s58, %s72
      %p74 = scmp.eq.s32.totalorder %s27, 0
      %p75 = por %p73, %p74
      %s77 = sadd.s32 %s76, 1
      %p80 = scmp.eq.s32.totalorder %s21, 1
      %p81 = scmp.ne.s32.totalorder %s76, %s78
      %p82 = scmp.eq.s32.totalorder %s21, 0
      %p83 = por %p81, %p82
      %p84 = scmp.ne.s32.totalorder %s76, %s78
      %p85 = scmp.eq.s32.totalorder %s26, 1
      %p86 = por %p84, %p85
      %p87 = scmp.ne.s32.totalorder %s78, %s79
      %p88 = scmp.eq.s32.totalorder %s26, 0
      %p89 = por %p87, %p88
      %p90 = scmp.ne.s32.totalorder %s78, %s79
      %p91 = scmp.eq.s32.totalorder %s27, 1
      %p92 = por %p90, %p91
      %p94 = scmp.ne.s32.totalorder %s79, %s93
      %p95 = scmp.eq.s32.totalorder %s27, 0
      %p96 = por %p94, %p95
      %s98 = sadd.s32 %s97, 1
      %p101 = scmp.eq.s32.totalorder %s21, 1
      %p102 = scmp.ne.s32.totalorder %s97, %s99
      %p103 = scmp.eq.s32.totalorder %s21, 0
      %p104 = por %p102, %p103
      %p105 = scmp.ne.s32.totalorder %s97, %s99
      %p106 = scmp.eq.s32.totalorder %s26, 1
      %p107 = por %p105, %p106
      %p108 = scmp.ne.s32.totalorder %s99, %s100
      %p109 = scmp.eq.s32.totalorder %s26, 0
      %p110 = por %p108, %p109
      %p111 = scmp.ne.s32.totalorder %s99, %s100
      %p112 = scmp.eq.s32.totalorder %s27, 1
      %p113 = por %p111, %p112
      %p115 = scmp.ne.s32.totalorder %s100, %s114
      %p116 = scmp.eq.s32.totalorder %s27, 0
      %p117 = por %p115, %p116
      %s119 = sadd.s32 %s118, 1
      %p122 = scmp.eq.s32.totalorder %s21, 1
      %p123 = scmp.ne.s32.totalorder %s118, %s120
      %p124 = scmp.eq.s32.totalorder %s21, 0
      %p125 = por %p123, %p124
      %p126 = scmp.ne.s32.totalorder %s118, %s120
      %p127 = scmp.eq.s32.totalorder %s26, 1
      %p128 = por %p126, %p127
      %p129 = scmp.ne.s32.totalorder %s120, %s121
      %p130 = scmp.eq.s32.totalorder %s26, 0
      %p131 = por %p129, %p130
      %p132 = scmp.ne.s32.totalorder %s120, %s121
      %p133 = scmp.eq.s32.totalorder %s27, 1
      %p134 = por %p132, %p133
      %p136 = scmp.ne.s32.totalorder %s121, %s135
      %p137 = scmp.eq.s32.totalorder %s27, 0
      %p138 = por %p136, %p137
      %s140 = sadd.s32 %s139, 1
      %p143 = scmp.eq.s32.totalorder %s21, 1
      %p144 = scmp.ne.s32.totalorder %s139, %s141
      %p145 = scmp.eq.s32.totalorder %s21, 0
      %p146 = por %p144, %p145
      %p147 = scmp.ne.s32.totalorder %s139, %s141
      %p148 = scmp.eq.s32.totalorder %s26, 1
      %p149 = por %p147, %p148
      %p150 = scmp.ne.s32.totalorder %s141, %s142
      %p151 = scmp.eq.s32.totalorder %s26, 0
      %p152 = por %p150, %p151
      %p153 = scmp.ne.s32.totalorder %s141, %s142
      %p154 = scmp.eq.s32.totalorder %s27, 1
      %p155 = por %p153, %p154
      %p157 = scmp.ne.s32.totalorder %s142, %s156
      %p158 = scmp.eq.s32.totalorder %s27, 0
      %p159 = por %p157, %p158
      %s161 = sadd.s32 %s160, 1
      %p164 = scmp.eq.s32.totalorder %s21, 1
      %p165 = scmp.ne.s32.totalorder %s160, %s162
      %p166 = scmp.eq.s32.totalorder %s21, 0
      %p167 = por %p165, %p166
      %p168 = scmp.ne.s32.totalorder %s160, %s162
      %p169 = scmp.eq.s32.totalorder %s26, 1
      %p170 = por %p168, %p169
      %p171 = scmp.ne.s32.totalorder %s162, %s163
      %p172 = scmp.eq.s32.totalorder %s26, 0
      %p173 = por %p171, %p172
      %p174 = scmp.ne.s32.totalorder %s162, %s163
      %p175 = scmp.eq.s32.totalorder %s27, 1
      %p176 = por %p174, %p175
      %p178 = scmp.ne.s32.totalorder %s163, %s177
      %p179 = scmp.eq.s32.totalorder %s27, 0
      %p180 = por %p178, %p179
      %s181 = ssub.s32 %s21, %s28
      %p182 = scmp.eq.s32.totalorder %s181, 0
      %s184 = sadd.s32 %s183, 1
      %s185 = scalar_select %p182, %s183, %s184
      %p188 = pneg %p182
      %p189 = scmp.eq.s32.totalorder %s21, 1
      %p190 = por %p188, %p189
      %p191 = scmp.ne.s32.totalorder %s183, %s186
      %p192 = scmp.eq.s32.totalorder %s21, 0
      %p193 = por %p191, %p192
      %p194 = scmp.ne.s32.totalorder %s183, %s186
      %p195 = scmp.eq.s32.totalorder %s26, 1
      %p196 = por %p194, %p195
      %p197 = scmp.ne.s32.totalorder %s186, %s187
      %p198 = scmp.eq.s32.totalorder %s26, 0
      %p199 = por %p197, %p198
      %p200 = scmp.ne.s32.totalorder %s186, %s187
      %p201 = scmp.eq.s32.totalorder %s27, 1
      %p202 = por %p200, %p201
      %p204 = scmp.ne.s32.totalorder %s187, %s203
      %p205 = scmp.eq.s32.totalorder %s27, 0
      %p206 = por %p204, %p205
      %p207 = scmp.le.s32.totalorder 1, %s21
      %p208 = scmp.lt.s32.totalorder %s21, 3
      %p209 = pnand %p207, %p208
      %p210 = pneg %p209
      // Predicated region
      $region9: #{tpu_custom_call.1} parent=5 // pred_check
        _
      $region10: #{tpu_custom_call.1} parent=5 // pred_check_branch
        %212 = sbr.rel (%p209) target = $region12
      $region11: #{tpu_custom_call.1} parent=5 // pred_region
        %s213 = ssub.s32 %s21, 1
        // Predicated region
        $region13: #{tpu_custom_call.1} parent=11 // pred_check
          %p214 = pneg %p68
        $region14: #{tpu_custom_call.1} parent=11 // pred_check_branch
          %216 = sbr.rel (%p214) target = $region16
        $region15: #{tpu_custom_call.1} parent=11 // pred_region
          %s218 = ssub.s32 1024, 1024
          %219 = vsyncadd [#allocation6], %s218
          %s220 = sshll.u32 [#allocation5], 4
          %s221 = int_to_ptr.vmem [resolvable:$true] %s220
          %226 = dma.hbm_to_vmem [thread:$0]  %s1, 1024, %s221, [#allocation6], 64, 64, 4
        $region16: #{tpu_custom_call.1} parent=11 // pred_fallthru
          _
        // Predicated region
        $region17: #{tpu_custom_call.1} parent=11 // pred_check
          %p227 = pneg %p89
        $region18: #{tpu_custom_call.1} parent=11 // pred_check_branch
          %229 = sbr.rel (%p227) target = $region20
        $region19: #{tpu_custom_call.1} parent=11 // pred_region
          _
        $region20: #{tpu_custom_call.1} parent=11 // pred_fallthru
          _
        // Predicated region
        $region21: #{tpu_custom_call.1} parent=11 // pred_check
          %p230 = pneg %p110
        $region22: #{tpu_custom_call.1} parent=11 // pred_check_branch
          %232 = sbr.rel (%p230) target = $region24
        $region23: #{tpu_custom_call.1} parent=11 // pred_region
          %s234 = ssub.s32 1024, 1024
          %235 = vsyncadd [#allocation6], %s234
          %s236 = sshll.u32 [#allocation7], 4
          %s237 = int_to_ptr.vmem [resolvable:$true] %s236
          %242 = dma.hbm_to_vmem [thread:$0]  %s3, 1024, %s237, [#allocation6], 64, 64, 4
        $region24: #{tpu_custom_call.1} parent=11 // pred_fallthru
          _
        // Predicated region
        $region25: #{tpu_custom_call.1} parent=11 // pred_check
          %p243 = pneg %p131
        $region26: #{tpu_custom_call.1} parent=11 // pred_check_branch
          %245 = sbr.rel (%p243) target = $region28
        $region27: #{tpu_custom_call.1} parent=11 // pred_region
          _
        $region28: #{tpu_custom_call.1} parent=11 // pred_fallthru
          _
        // Predicated region
        $region29: #{tpu_custom_call.1} parent=11 // pred_check
          %p246 = pneg %p152
        $region30: #{tpu_custom_call.1} parent=11 // pred_check_branch
          %248 = sbr.rel (%p246) target = $region32
        $region31: #{tpu_custom_call.1} parent=11 // pred_region
          %s250 = ssub.s32 1024, 1024
          %251 = vsyncadd [#allocation9], %s250
          %s252 = sshll.u32 [#allocation8], 4
          %s253 = int_to_ptr.vmem [resolvable:$true] %s252
          %258 = dma.hbm_to_vmem [thread:$0]  %s5, 1024, %s253, [#allocation9], 64, 64, 4
        $region32: #{tpu_custom_call.1} parent=11 // pred_fallthru
          _
        // Predicated region
        $region33: #{tpu_custom_call.1} parent=11 // pred_check
          %p259 = pneg %p173
        $region34: #{tpu_custom_call.1} parent=11 // pred_check_branch
          %261 = sbr.rel (%p259) target = $region36
        $region35: #{tpu_custom_call.1} parent=11 // pred_region
          _
        $region36: #{tpu_custom_call.1} parent=11 // pred_fallthru
          _
      $region12: #{tpu_custom_call.1} parent=5 // pred_fallthru
        _
      %p262 = scmp.lt.s32.totalorder %s21, 2
      // Predicated region
      $region37: #{tpu_custom_call.1} parent=5 // pred_check
        %p263 = pneg %p262
      $region38: #{tpu_custom_call.1} parent=5 // pred_check_branch
        %265 = sbr.rel (%p263) target = $region40
      $region39: #{tpu_custom_call.1} parent=5 // pred_region
        // Predicated region
        $region41: #{tpu_custom_call.1} parent=39 // pred_check
          %p266 = pneg %p41
        $region42: #{tpu_custom_call.1} parent=39 // pred_check_branch
          %268 = sbr.rel (%p266) target = $region44
        $region43: #{tpu_custom_call.1} parent=39 // pred_region
          %s269 = sand.u32 %s31, 1
          %s270 = scalar_lea.sflag [#allocation3], %s269
          %s271 = sand.u32 %s31, 1
          %s272 = smul.addr %s271, 4
          %s273 = scalar_lea.vmem [#allocation2], %s272
          %s275 = ssub.s32 64, 64
          %276 = vsyncadd %s270, %s275
          %s277 = smul.addr %s21, 64
          %s278 = scalar_lea.hbm %s0, %s277
          %s280 = sshll.u32 %s273, 4
          %s281 = int_to_ptr.vmem [resolvable:$true] %s280
          %283 = dma.hbm_to_vmem [thread:$0]  %s278, 64, %s281, %s270
        $region44: #{tpu_custom_call.1} parent=39 // pred_fallthru
          _
      $region40: #{tpu_custom_call.1} parent=5 // pred_fallthru
        _
      %p284 = scmp.le.s32.totalorder 1, %s21
      %p285 = scmp.lt.s32.totalorder %s21, 3
      %p286 = pnand %p284, %p285
      %p287 = pneg %p286
      // Predicated region
      $region45: #{tpu_custom_call.1} parent=5 // pred_check
        _
      $region46: #{tpu_custom_call.1} parent=5 // pred_check_branch
        %289 = sbr.rel (%p286) target = $region48
      $region47: #{tpu_custom_call.1} parent=5 // pred_region
        %s290 = ssub.s32 %s21, 1
        %s291 = sand.u32 %s34, 1
        %s292 = scalar_lea.sflag [#allocation3], %s291
        %s293 = sand.u32 %s34, 1
        %s294 = smul.addr %s293, 4
        %s295 = scalar_lea.vmem [#allocation2], %s294
        // Predicated region
        $region49: #{tpu_custom_call.1} parent=47 // pred_check
          %p296 = pneg %p47
        $region50: #{tpu_custom_call.1} parent=47 // pred_check_branch
          %298 = sbr.rel (%p296) target = $region52
        $region51: #{tpu_custom_call.1} parent=47 // pred_region
          %299 = dma.done %s292, 64
        $region52: #{tpu_custom_call.1} parent=47 // pred_fallthru
          _
        // Predicated region
        $region53: #{tpu_custom_call.1} parent=47 // pred_check
          %p300 = pneg %p68
        $region54: #{tpu_custom_call.1} parent=47 // pred_check_branch
          %302 = sbr.rel (%p300) target = $region56
        $region55: #{tpu_custom_call.1} parent=47 // pred_region
          %303 = dma.done [#allocation6], 1024
        $region56: #{tpu_custom_call.1} parent=47 // pred_fallthru
          _
        // Predicated region
        $region57: #{tpu_custom_call.1} parent=47 // pred_check
          %p304 = pneg %p110
        $region58: #{tpu_custom_call.1} parent=47 // pred_check_branch
          %306 = sbr.rel (%p304) target = $region60
        $region59: #{tpu_custom_call.1} parent=47 // pred_region
          %307 = dma.done [#allocation6], 1024
        $region60: #{tpu_custom_call.1} parent=47 // pred_fallthru
          _
        // Predicated region
        $region61: #{tpu_custom_call.1} parent=47 // pred_check
          %p308 = pneg %p152
        $region62: #{tpu_custom_call.1} parent=47 // pred_check_branch
          %310 = sbr.rel (%p308) target = $region64
        $region63: #{tpu_custom_call.1} parent=47 // pred_region
          %311 = dma.done [#allocation9], 1024
        $region64: #{tpu_custom_call.1} parent=47 // pred_fallthru
          _
        %s312 = sand.u32 %s34, 1
        %s313 = scalar_lea.sflag [#allocation3], %s312
        %s314 = sand.u32 %s34, 1
        %s315 = smul.addr %s314, 4
        %s316 = scalar_lea.vmem [#allocation2], %s315
        %p317 = pneg %p47
        %p318 = pneg %p44
        %p319 = pneg %p68
        %p320 = pneg %p65
        %p321 = pneg %p89
        %p322 = pneg %p86
        %p323 = pneg %p110
        %p324 = pneg %p107
        %p325 = pneg %p131
        %p326 = pneg %p128
        %p327 = pneg %p152
        %p328 = pneg %p149
        %p329 = pneg %p173
        %p330 = pneg %p170
        %p331 = pneg %p199
        %p332 = pneg %p196
        %s333 = sand.u32 %s186, 1
        %s334 = scalar_lea.sflag [#allocation4], %s333
        %s335 = sand.u32 %s186, 1
        %s336 = smul.addr %s335, 8
        %s337 = scalar_lea.vmem [#allocation10], %s336
        %v339 = vld [vmem:[%s295] sm:$0xf]
        %v340 = vld [vmem:[#allocation5] sm:$0xf]
        %v341 = vld [vmem:[#allocation5 + $0x4] sm:$0xf]
        %v342 = vld [vmem:[#allocation5 + $0x8] sm:$0xf]
        %v343 = vld [vmem:[#allocation5 + $0xc] sm:$0xf]
        %v344 = vld [vmem:[#allocation5 + $0x10] sm:$0xf]
        %v345 = vld [vmem:[#allocation5 + $0x14] sm:$0xf]
        %v346 = vld [vmem:[#allocation5 + $0x18] sm:$0xf]
        %v347 = vld [vmem:[#allocation5 + $0x1c] sm:$0xf]
        %v348 = vld [vmem:[#allocation5 + $0x20] sm:$0xf]
        %v349 = vld [vmem:[#allocation5 + $0x24] sm:$0xf]
        %v350 = vld [vmem:[#allocation5 + $0x28] sm:$0xf]
        %v351 = vld [vmem:[#allocation5 + $0x2c] sm:$0xf]
        %v352 = vld [vmem:[#allocation5 + $0x30] sm:$0xf]
        %v353 = vld [vmem:[#allocation5 + $0x34] sm:$0xf]
        %v354 = vld [vmem:[#allocation5 + $0x38] sm:$0xf]
        %v355 = vld [vmem:[#allocation5 + $0x3c] sm:$0xf]
        %v356 = vld [vmem:[%s2] sm:$0x1]
        %v358 = vlaneseq
        %v359 = vshrl.u32 %v358, 7
        %v360 = vsub.s32 0, %v359
        %v361 = vrot.slane %v356, %v360
        %v379 = vunpack.c.l.b16 %v340
        %v380 = vunpack.c.l.b16 %v341
        %v381 = vunpack.c.l.b16 %v342
        %v382 = vunpack.c.l.b16 %v343
        %v383 = vunpack.c.l.b16 %v344
        %v384 = vunpack.c.l.b16 %v345
        %v385 = vunpack.c.l.b16 %v346
        %v386 = vunpack.c.l.b16 %v347
        %v387 = vunpack.c.l.b16 %v348
        %v388 = vunpack.c.l.b16 %v349
        %v389 = vunpack.c.l.b16 %v350
        %v390 = vunpack.c.l.b16 %v351
        %v391 = vunpack.c.l.b16 %v352
        %v392 = vunpack.c.l.b16 %v353
        %v393 = vunpack.c.l.b16 %v354
        %v394 = vunpack.c.l.b16 %v355
        %v395 = vpack.c.b16 %v380, %v379
        %v396 = vpack.c.b16 %v382, %v381
        %v397 = vpack.c.b16 %v384, %v383
        %v398 = vpack.c.b16 %v386, %v385
        %v399 = vpack.c.b16 %v388, %v387
        %v400 = vpack.c.b16 %v390, %v389
        %v401 = vpack.c.b16 %v392, %v391
        %v402 = vpack.c.b16 %v394, %v393
        %411 = vmatprep.subr.bf16.mxu0 0
        %412 = vmatpush1.bf16.msra.mxu0 %v395
        %413 = vmatprep.subr.bf16.mxu0 0
        %414 = vmatpush1.bf16.msra.mxu0 %v396
        %415 = vmatprep.subr.bf16.mxu0 0
        %416 = vmatpush1.bf16.msra.mxu0 %v397
        %417 = vmatprep.subr.bf16.mxu0 0
        %418 = vmatpush1.bf16.msra.mxu0 %v398
        %419 = vmatprep.subr.bf16.mxu0 0
        %420 = vmatpush1.bf16.msra.mxu0 %v399
        %421 = vmatprep.subr.bf16.mxu0 0
        %422 = vmatpush1.bf16.msra.mxu0 %v400
        %423 = vmatprep.subr.bf16.mxu0 0
        %424 = vmatpush1.bf16.msra.mxu0 %v401
        %425 = vmatprep.subr.bf16.mxu0 0
        %426 = vmatpush1.bf16.msra.mxu0 %v402
        %427 = vmatprep.subr.bf16.mxu0 0
        %428 = vmatpush1.bf16.msra.mxu0 0
        %429 = vmatprep.subr.bf16.mxu0 0
        %430 = vmatpush1.bf16.msra.mxu0 0
        %431 = vmatprep.subr.bf16.mxu0 0
        %432 = vmatpush1.bf16.msra.mxu0 0
        %433 = vmatprep.subr.bf16.mxu0 0
        %434 = vmatpush1.bf16.msra.mxu0 0
        %435 = vmatprep.subr.bf16.mxu0 0
        %436 = vmatpush1.bf16.msra.mxu0 0
        %437 = vmatprep.subr.bf16.mxu0 0
        %438 = vmatpush1.bf16.msra.mxu0 0
        %439 = vmatprep.subr.bf16.mxu0 0
        %440 = vmatpush1.bf16.msra.mxu0 0
        %441 = vmatprep.subr.bf16.mxu0 0
        %442 = vmatpush1.bf16.msra.mxu0 0
        %443 = vmatprep.mubr.bf16.mxu0 0
        %444 = vmatmul.mubr.bf16.gmra.mrb[0].mxu0 %v339
        %v445 = vpop.f32.mrb[0].mxu0
        %v446 = vadd.f32 %v361, %v445
        %v447 = vpop.f32.mrb[0].mxu0
        %v448 = vpop.f32.mrb[0].mxu0
        %v449 = vpop.f32.mrb[0].mxu0
        %450 = vdwg.mxu0
        %v451 = vmul.f32 %v446, 0.5
        %v452 = vmul.f32 %v446, 0.70710677
        %v453 = verf.f32.pop %v452
        %v454 = vadd.f32 %v453, 1.0
        %v455 = vmul.f32 %v451, %v454
        %v456 = vpack.c.bf16 %v455, %v455
        %v457 = vld [vmem:[#allocation7] sm:$0xf]
        %v458 = vld [vmem:[#allocation7 + $0x4] sm:$0xf]
        %v459 = vld [vmem:[#allocation7 + $0x8] sm:$0xf]
        %v460 = vld [vmem:[#allocation7 + $0xc] sm:$0xf]
        %v461 = vld [vmem:[#allocation7 + $0x10] sm:$0xf]
        %v462 = vld [vmem:[#allocation7 + $0x14] sm:$0xf]
        %v463 = vld [vmem:[#allocation7 + $0x18] sm:$0xf]
        %v464 = vld [vmem:[#allocation7 + $0x1c] sm:$0xf]
        %v465 = vld [vmem:[#allocation7 + $0x20] sm:$0xf]
        %v466 = vld [vmem:[#allocation7 + $0x24] sm:$0xf]
        %v467 = vld [vmem:[#allocation7 + $0x28] sm:$0xf]
        %v468 = vld [vmem:[#allocation7 + $0x2c] sm:$0xf]
        %v469 = vld [vmem:[#allocation7 + $0x30] sm:$0xf]
        %v470 = vld [vmem:[#allocation7 + $0x34] sm:$0xf]
        %v471 = vld [vmem:[#allocation7 + $0x38] sm:$0xf]
        %v472 = vld [vmem:[#allocation7 + $0x3c] sm:$0xf]
        %v473 = vld [vmem:[%s4] sm:$0x1]
        %v475 = vlaneseq
        %v476 = vshrl.u32 %v475, 7
        %v477 = vsub.s32 0, %v476
        %v478 = vrot.slane %v473, %v477
        %v496 = vunpack.c.l.b16 %v457
        %v497 = vunpack.c.l.b16 %v458
        %v498 = vunpack.c.l.b16 %v459
        %v499 = vunpack.c.l.b16 %v460
        %v500 = vunpack.c.l.b16 %v461
        %v501 = vunpack.c.l.b16 %v462
        %v502 = vunpack.c.l.b16 %v463
        %v503 = vunpack.c.l.b16 %v464
        %v504 = vunpack.c.l.b16 %v465
        %v505 = vunpack.c.l.b16 %v466
        %v506 = vunpack.c.l.b16 %v467
        %v507 = vunpack.c.l.b16 %v468
        %v508 = vunpack.c.l.b16 %v469
        %v509 = vunpack.c.l.b16 %v470
        %v510 = vunpack.c.l.b16 %v471
        %v511 = vunpack.c.l.b16 %v472
        %v512 = vpack.c.b16 %v497, %v496
        %v513 = vpack.c.b16 %v499, %v498
        %v514 = vpack.c.b16 %v501, %v500
        %v515 = vpack.c.b16 %v503, %v502
        %v516 = vpack.c.b16 %v505, %v504
        %v517 = vpack.c.b16 %v507, %v506
        %v518 = vpack.c.b16 %v509, %v508
        %v519 = vpack.c.b16 %v511, %v510
        %528 = vmatprep.subr.bf16.mxu0 0
        %529 = vmatpush1.bf16.msra.mxu0 %v512
        %530 = vmatprep.subr.bf16.mxu0 0
        %531 = vmatpush1.bf16.msra.mxu0 %v513
        %532 = vmatprep.subr.bf16.mxu0 0
        %533 = vmatpush1.bf16.msra.mxu0 %v514
        %534 = vmatprep.subr.bf16.mxu0 0
        %535 = vmatpush1.bf16.msra.mxu0 %v515
        %536 = vmatprep.subr.bf16.mxu0 0
        %537 = vmatpush1.bf16.msra.mxu0 %v516
        %538 = vmatprep.subr.bf16.mxu0 0
        %539 = vmatpush1.bf16.msra.mxu0 %v517
        %540 = vmatprep.subr.bf16.mxu0 0
        %541 = vmatpush1.bf16.msra.mxu0 %v518
        %542 = vmatprep.subr.bf16.mxu0 0
        %543 = vmatpush1.bf16.msra.mxu0 %v519
        %544 = vmatprep.subr.bf16.mxu0 0
        %545 = vmatpush1.bf16.msra.mxu0 0
        %546 = vmatprep.subr.bf16.mxu0 0
        %547 = vmatpush1.bf16.msra.mxu0 0
        %548 = vmatprep.subr.bf16.mxu0 0
        %549 = vmatpush1.bf16.msra.mxu0 0
        %550 = vmatprep.subr.bf16.mxu0 0
        %551 = vmatpush1.bf16.msra.mxu0 0
        %552 = vmatprep.subr.bf16.mxu0 0
        %553 = vmatpush1.bf16.msra.mxu0 0
        %554 = vmatprep.subr.bf16.mxu0 0
        %555 = vmatpush1.bf16.msra.mxu0 0
        %556 = vmatprep.subr.bf16.mxu0 0
        %557 = vmatpush1.bf16.msra.mxu0 0
        %558 = vmatprep.subr.bf16.mxu0 0
        %559 = vmatpush1.bf16.msra.mxu0 0
        %560 = vmatprep.mubr.bf16.mxu0 0
        %561 = vmatmul.mubr.bf16.gmra.mrb[0].mxu0 %v456
        %v562 = vpop.f32.mrb[0].mxu0
        %v563 = vadd.f32 %v478, %v562
        %v564 = vpop.f32.mrb[0].mxu0
        %v565 = vpop.f32.mrb[0].mxu0
        %v566 = vpop.f32.mrb[0].mxu0
        %567 = vdwg.mxu0
        %v568 = vmul.f32 %v563, 0.5
        %v569 = vmul.f32 %v563, 0.70710677
        %v570 = verf.f32.pop %v569
        %v571 = vadd.f32 %v570, 1.0
        %v572 = vmul.f32 %v568, %v571
        %v573 = vpack.c.bf16 %v572, %v572
        %v574 = vld [vmem:[#allocation8] sm:$0xf]
        %v575 = vld [vmem:[#allocation8 + $0x4] sm:$0xf]
        %v576 = vld [vmem:[#allocation8 + $0x8] sm:$0xf]
        %v577 = vld [vmem:[#allocation8 + $0xc] sm:$0xf]
        %v578 = vld [vmem:[#allocation8 + $0x10] sm:$0xf]
        %v579 = vld [vmem:[#allocation8 + $0x14] sm:$0xf]
        %v580 = vld [vmem:[#allocation8 + $0x18] sm:$0xf]
        %v581 = vld [vmem:[#allocation8 + $0x1c] sm:$0xf]
        %v582 = vld [vmem:[#allocation8 + $0x20] sm:$0xf]
        %v583 = vld [vmem:[#allocation8 + $0x24] sm:$0xf]
        %v584 = vld [vmem:[#allocation8 + $0x28] sm:$0xf]
        %v585 = vld [vmem:[#allocation8 + $0x2c] sm:$0xf]
        %v586 = vld [vmem:[#allocation8 + $0x30] sm:$0xf]
        %v587 = vld [vmem:[#allocation8 + $0x34] sm:$0xf]
        %v588 = vld [vmem:[#allocation8 + $0x38] sm:$0xf]
        %v589 = vld [vmem:[#allocation8 + $0x3c] sm:$0xf]
        %v590 = vld [vmem:[%s6] sm:$0x1]
        %v592 = vlaneseq
        %v593 = vshrl.u32 %v592, 7
        %v594 = vsub.s32 0, %v593
        %v595 = vrot.slane %v590, %v594
        %v613 = vunpack.c.l.b16 %v574
        %v614 = vunpack.c.l.b16 %v575
        %v615 = vunpack.c.l.b16 %v576
        %v616 = vunpack.c.l.b16 %v577
        %v617 = vunpack.c.l.b16 %v578
        %v618 = vunpack.c.l.b16 %v579
        %v619 = vunpack.c.l.b16 %v580
        %v620 = vunpack.c.l.b16 %v581
        %v621 = vunpack.c.l.b16 %v582
        %v622 = vunpack.c.l.b16 %v583
        %v623 = vunpack.c.l.b16 %v584
        %v624 = vunpack.c.l.b16 %v585
        %v625 = vunpack.c.l.b16 %v586
        %v626 = vunpack.c.l.b16 %v587
        %v627 = vunpack.c.l.b16 %v588
        %v628 = vunpack.c.l.b16 %v589
        %v629 = vpack.c.b16 %v614, %v613
        %v630 = vpack.c.b16 %v616, %v615
        %v631 = vpack.c.b16 %v618, %v617
        %v632 = vpack.c.b16 %v620, %v619
        %v633 = vpack.c.b16 %v622, %v621
        %v634 = vpack.c.b16 %v624, %v623
        %v635 = vpack.c.b16 %v626, %v625
        %v636 = vpack.c.b16 %v628, %v627
        %645 = vmatprep.subr.bf16.mxu0 0
        %646 = vmatpush1.bf16.msra.mxu0 %v629
        %647 = vmatprep.subr.bf16.mxu0 0
        %648 = vmatpush1.bf16.msra.mxu0 %v630
        %649 = vmatprep.subr.bf16.mxu0 0
        %650 = vmatpush1.bf16.msra.mxu0 %v631
        %651 = vmatprep.subr.bf16.mxu0 0
        %652 = vmatpush1.bf16.msra.mxu0 %v632
        %653 = vmatprep.subr.bf16.mxu0 0
        %654 = vmatpush1.bf16.msra.mxu0 %v633
        %655 = vmatprep.subr.bf16.mxu0 0
        %656 = vmatpush1.bf16.msra.mxu0 %v634
        %657 = vmatprep.subr.bf16.mxu0 0
        %658 = vmatpush1.bf16.msra.mxu0 %v635
        %659 = vmatprep.subr.bf16.mxu0 0
        %660 = vmatpush1.bf16.msra.mxu0 %v636
        %661 = vmatprep.subr.bf16.mxu0 0
        %662 = vmatpush1.bf16.msra.mxu0 0
        %663 = vmatprep.subr.bf16.mxu0 0
        %664 = vmatpush1.bf16.msra.mxu0 0
        %665 = vmatprep.subr.bf16.mxu0 0
        %666 = vmatpush1.bf16.msra.mxu0 0
        %667 = vmatprep.subr.bf16.mxu0 0
        %668 = vmatpush1.bf16.msra.mxu0 0
        %669 = vmatprep.subr.bf16.mxu0 0
        %670 = vmatpush1.bf16.msra.mxu0 0
        %671 = vmatprep.subr.bf16.mxu0 0
        %672 = vmatpush1.bf16.msra.mxu0 0
        %673 = vmatprep.subr.bf16.mxu0 0
        %674 = vmatpush1.bf16.msra.mxu0 0
        %675 = vmatprep.subr.bf16.mxu0 0
        %676 = vmatpush1.bf16.msra.mxu0 0
        %677 = vmatprep.mubr.bf16.mxu0 0
        %678 = vmatmul.mubr.bf16.gmra.mrb[0].mxu0 %v573
        %v679 = vpop.f32.mrb[0].mxu0
        %v680 = vadd.f32 %v595, %v679
        %v681 = vpop.f32.mrb[0].mxu0
        %v682 = vpop.f32.mrb[0].mxu0
        %v683 = vpop.f32.mrb[0].mxu0
        %684 = vdwg.mxu0
        %v685 = vmul.f32 %v680, %v680
        %686 = vadd.xlane.f32.xlu0 %v685
        %v687 = vpop.xlane.xlu0 %686
        %v688 = vmax.f32 %v687, 1e-24
        %v689 = vrsqrt.pop %v688
        %v690 = vmul.f32 %v680, %v689
        %691 = vst [vmem:[%s337] sm:$0xff] %v690
        %s692 = sand.u32 %s186, 1
        %s693 = scalar_lea.sflag [#allocation4], %s692
        %s694 = sand.u32 %s186, 1
        %s695 = smul.addr %s694, 8
        %s696 = scalar_lea.vmem [#allocation10], %s695
        // Predicated region
        $region65: #{tpu_custom_call.1} parent=47 // pred_check
          %p697 = pneg %p196
        $region66: #{tpu_custom_call.1} parent=47 // pred_check_branch
          %699 = sbr.rel (%p697) target = $region68
        $region67: #{tpu_custom_call.1} parent=47 // pred_region
          %s701 = ssub.s32 128, 128
          %702 = vsyncadd %s693, %s701
          %s703 = smul.addr %s26, 128
          %s704 = scalar_lea.hbm %s7, %s703
          %s706 = sshll.u32 %s696, 4
          %s707 = int_to_ptr.vmem [resolvable:$true] %s706
          %709 = dma.vmem_to_hbm [thread:$0]  %s707, 128, %s704, %s693
        $region68: #{tpu_custom_call.1} parent=47 // pred_fallthru
          _
      $region48: #{tpu_custom_call.1} parent=5 // pred_fallthru
        _
      %p710 = scmp.le.s32.totalorder 2, %s21
      // Predicated region
      $region69: #{tpu_custom_call.1} parent=5 // pred_check
        %p711 = pneg %p710
      $region70: #{tpu_custom_call.1} parent=5 // pred_check_branch
        %713 = sbr.rel (%p711) target = $region72
      $region71: #{tpu_custom_call.1} parent=5 // pred_region
        %s714 = ssub.s32 %s21, 2
        // Predicated region
        $region73: #{tpu_custom_call.1} parent=71 // pred_check
          %p715 = pneg %p202
        $region74: #{tpu_custom_call.1} parent=71 // pred_check_branch
          %717 = sbr.rel (%p715) target = $region76
        $region75: #{tpu_custom_call.1} parent=71 // pred_region
          %s718 = sand.u32 %s187, 1
          %s719 = scalar_lea.sflag [#allocation4], %s718
          %s720 = sand.u32 %s187, 1
          %s721 = smul.addr %s720, 8
          %s722 = scalar_lea.vmem [#allocation10], %s721
          %723 = dma.done %s719, 128
        $region76: #{tpu_custom_call.1} parent=71 // pred_fallthru
          _
      $region72: #{tpu_custom_call.1} parent=5 // pred_fallthru
        _
    $region6: #{tpu_custom_call.1} parent=1 // loop_footer
      %s25 = sadd.s32 1, %s21
    $region7: #{tpu_custom_call.1} parent=1 // loop_footer_branch
      %20 = sbr.rel target = $region3
    $region8: #{tpu_custom_call.1} parent=1 // loop_exit
      _
    %724 = vsyncpa [#allocation3], 1
    %s725 = scalar_lea.sflag [#allocation3], 1
    %726 = vsyncpa %s725, 1
    %727 = vsyncpa [#allocation6], 1
    %728 = vsyncpa [#allocation9], 1
    %729 = vsyncpa [#allocation4], 1
    %s730 = scalar_lea.sflag [#allocation4], 1
    %731 = vsyncpa %s730, 1

</llo_original>
